<compile_context>
chip_gen: v7x
topology: tpu7x:2x2x1
jax: 0.10.0
libtpu: 0.0.40
codegen_flags: <defaults>
</compile_context>

<pallas_src>
import functools

import jax
import jax.numpy as jnp
from jax.experimental import pallas as pl
from jax.experimental.pallas import tpu as pltpu


HIDDEN = 32          # nn.Linear(state_dim + 1, 32) / nn.Linear(32, 32)
LANE = 128           # lane width: everything is padded to 128 columns
BIAS_ROW = 128       # row of the packed slab that carries the layer bias
SLAB_ROWS = 144      # 128 weight rows + bias row, rounded up to 16 (bf16 tiles)
MAX_TB = 1024        # batch-tile cap (512-1024 row tiles sit at ~85% of roofline)


def _round_up(x, m):
    return (x + m - 1) // m * m


# --------------------------------------------------------------------------- #
# Kernel
# --------------------------------------------------------------------------- #
def _env_model_kernel(action_ref, state_ref, slab_ref, o_ref, *, state_dim):
    """One batch tile: [TB, state_dim] f32 -> [TB, state_dim] f32.

    slab_ref : [3, SLAB_ROWS, 128] bf16
        layer L: rows 0..127 = weight (zero padded), row 128 = bias.
        layer 0 additionally has the fc1 action row at row `state_dim`.
    action_ref : (1, 1) f32 in SMEM.
    """
    a = action_ref[0, 0]                                         # f32 scalar (SMEM)
    x = state_ref[...].astype(jnp.bfloat16)                      # [TB, S]

    # ---- fc1 + ReLU  (action feature folded into the bias) ----
    w1 = slab_ref[0, :state_dim, :]                              # [S, 128]  bf16
    w1a = slab_ref[0, state_dim:state_dim + 1, :].astype(jnp.float32)   # [1, 128]
    b1 = slab_ref[0, BIAS_ROW:BIAS_ROW + 1, :].astype(jnp.float32)      # [1, 128]
    h = jnp.dot(x, w1, preferred_element_type=jnp.float32)       # [TB, 128] f32
    h = jnp.maximum(h + (b1 + a * w1a), 0.0)

    # ---- fc2 + ReLU ----
    w2 = slab_ref[1, :LANE, :]                                   # [128, 128] bf16
    b2 = slab_ref[1, BIAS_ROW:BIAS_ROW + 1, :].astype(jnp.float32)
    h = jnp.dot(h.astype(jnp.bfloat16), w2,
                preferred_element_type=jnp.float32) + b2
    h = jnp.maximum(h, 0.0)

    # ---- state_head (no activation): only the live state_dim lanes hit HBM ----
    w3 = slab_ref[2, :LANE, :]                                   # [128, 128] bf16
    b3 = slab_ref[2, BIAS_ROW:BIAS_ROW + 1, :].astype(jnp.float32)
    out = jnp.dot(h.astype(jnp.bfloat16), w3,
                  preferred_element_type=jnp.float32) + b3       # [TB, 128] f32
    o_ref[...] = out[:, :state_dim].astype(o_ref.dtype)          # [TB, S]


# --------------------------------------------------------------------------- #
# Parameter handling
# --------------------------------------------------------------------------- #
def init_params(state_dim, key):
    """Raw PyTorch-Linear-like parameters (weights stored as weight.T)."""
    k1, k2, k3, k4, k5, k6 = jax.random.split(key, 6)
    in1 = state_dim + 1

    def uni(k, shape, fan_in):
        bound = 1.0 / jnp.sqrt(jnp.float32(fan_in))
        return jax.random.uniform(k, shape, jnp.float32, -bound, bound)

    return {
        "w1": uni(k1, (in1, HIDDEN), in1),           # fc1.weight.T
        "b1": uni(k2, (HIDDEN,), in1),               # fc1.bias
        "w2": uni(k3, (HIDDEN, HIDDEN), HIDDEN),     # fc2.weight.T
        "b2": uni(k4, (HIDDEN,), HIDDEN),            # fc2.bias
        "w3": uni(k5, (HIDDEN, state_dim), HIDDEN),  # state_head.weight.T
        "b3": uni(k6, (state_dim,), HIDDEN),         # state_head.bias
    }


def pack_params(params, state_dim):
    """Pack all weights+biases into one lane-dense bf16 [3, SLAB_ROWS, 128] slab."""
    # Layout assumption: fc1's action row sits at row `state_dim`, the bias at
    # row BIAS_ROW, and the head output occupies the first state_dim lanes.
    assert state_dim + 1 <= BIAS_ROW, (
        f"state_dim={state_dim} too large for packed slab (needs state_dim <= 127)")
    assert state_dim <= LANE, (
        f"state_dim={state_dim} must fit in {LANE} output lanes")

    slab = jnp.zeros((3, SLAB_ROWS, LANE), jnp.float32)
    slab = slab.at[0, :state_dim + 1, :HIDDEN].set(params["w1"])  # incl. action row
    slab = slab.at[0, BIAS_ROW, :HIDDEN].set(params["b1"])
    slab = slab.at[1, :HIDDEN, :HIDDEN].set(params["w2"])
    slab = slab.at[1, BIAS_ROW, :HIDDEN].set(params["b2"])
    slab = slab.at[2, :HIDDEN, :state_dim].set(params["w3"])
    slab = slab.at[2, BIAS_ROW, :state_dim].set(params["b3"])
    return slab.astype(jnp.bfloat16)


# --------------------------------------------------------------------------- #
# Forward wrapper
# --------------------------------------------------------------------------- #
def environment_model_forward(state, action, slab):
    """Mirrors EnvironmentModel.forward(state, action).

    state : [B, state_dim] float32
    action: scalar (python number or 0-d jax array) -- passed as an SMEM
            scalar, so varying actions do not retrace.
    slab  : packed bf16 parameters from pack_params().
    """
    batch, state_dim = state.shape
    assert state_dim + 1 <= BIAS_ROW and state_dim <= LANE, "state_dim too large"
    state = state.astype(jnp.float32)
    action_arr = jnp.asarray(action, jnp.float32).reshape(1, 1)

    # Batch tiling: aim for >=2 grid steps (v7x has 2 TensorCores and the grid
    # axis is "parallel"), capped at MAX_TB rows per step.  Small batches
    # collapse to a single step.
    tb = min(_round_up(pl.cdiv(batch, 2), 8), MAX_TB)
    grid = (pl.cdiv(batch, tb),)   # partial last block: OOB reads padded, writes dropped

    # Cost hint with MXU-padded contraction/output widths (lane width 128).
    flops = 2 * batch * LANE * (3 * LANE)
    bytes_accessed = (4 * batch * state_dim          # state read  (f32)
                      + 2 * 3 * SLAB_ROWS * LANE     # weight slab (bf16, resident)
                      + 4 * batch * state_dim        # output write (f32)
                      + 4)                           # action scalar

    out = pl.pallas_call(
        functools.partial(_env_model_kernel, state_dim=state_dim),
        out_shape=jax.ShapeDtypeStruct((batch, state_dim), jnp.float32),
        grid=grid,
        in_specs=[
            pl.BlockSpec((1, 1), lambda i: (0, 0),
                         memory_space=pltpu.MemorySpace.SMEM),        # action scalar
            pl.BlockSpec((tb, state_dim), lambda i: (i, 0)),          # state tile
            pl.BlockSpec((3, SLAB_ROWS, LANE), lambda i: (0, 0, 0)),  # resident weights
        ],
        out_specs=pl.BlockSpec((tb, state_dim), lambda i: (i, 0)),    # only live lanes
        compiler_params=pltpu.CompilerParams(
            dimension_semantics=("parallel",)),
        cost_estimate=pl.CostEstimate(flops=flops, transcendentals=0,
                                      bytes_accessed=bytes_accessed),
    )(action_arr, state, slab)

    return out


# --------------------------------------------------------------------------- #
# Pure-JAX reference (mirrors the PyTorch forward exactly, f32 throughout)
# --------------------------------------------------------------------------- #
def _reference_forward(state, action, params):
    batch = state.shape[0]
    action_col = jnp.full((batch, 1), jnp.float32(action), dtype=jnp.float32)
    x = jnp.concatenate([state, action_col], axis=-1)
    h = jax.nn.relu(x @ params["w1"] + params["b1"])
    h = jax.nn.relu(h @ params["w2"] + params["b2"])
    return h @ params["w3"] + params["b3"]


if __name__ == "__main__":
    batch, state_dim = 8, 4
    action = 2  # discrete action index, treated as a float scalar feature

    key = jax.random.PRNGKey(0)
    k_state, k_params = jax.random.split(key)
    state = jax.random.normal(k_state, (batch, state_dim), dtype=jnp.float32)
    params = init_params(state_dim, k_params)
    slab = pack_params(params, state_dim)   # one-time packing (bf16)

    next_state = environment_model_forward(state, action, slab)
    next_state = jax.block_until_ready(next_state)

    ref = _reference_forward(state, action, params)
    assert next_state.shape == (batch, state_dim)
    # bf16 MXU operands: tolerance loosened vs the pure-f32 reference.
    max_err = float(jnp.max(jnp.abs(next_state - ref)))
    assert jnp.allclose(next_state, ref, atol=5e-2, rtol=5e-2), (
        f"mismatch, max abs err = {max_err}")

    print("KERNEL_OK")
</pallas_src>

<mosaic_0001>
module attributes {stable_mosaic.version = 11 : i64} {
  func.func @_env_model_kernel(%arg0: i32, %arg1: memref<1x1xf32, #tpu.memory_space<smem>>, %arg2: memref<8x4xf32, #tpu.memory_space<vmem>>, %arg3: memref<3x144x128xbf16, #tpu.memory_space<vmem>>, %arg4: memref<8x4xf32, #tpu.memory_space<vmem>>) attributes {dimension_semantics = [#tpu.dimension_semantics<parallel>], iteration_bounds = array<i64: 1>, scalar_prefetch = 0 : i64, scratch_operands = 0 : i64, tpu.core_type = #tpu.core_type<tc>, window_params = [{transform_indices = @transform_0, window_bounds = array<i64: 1, 1>}, {transform_indices = @transform_1, window_bounds = array<i64: 8, 4>}, {pipeline_mode = #tpu.pipeline_mode<synchronous>, transform_indices = @transform_2, window_bounds = array<i64: 3, 144, 128>}, {transform_indices = @transform_3, window_bounds = array<i64: 8, 4>}]} {
    %c0 = arith.constant 0 : index
    %c0_0 = arith.constant 0 : index
    %0 = memref.load %arg1[%c0, %c0_0] : memref<1x1xf32, #tpu.memory_space<smem>>
    %c0_1 = arith.constant 0 : index
    %c0_2 = arith.constant 0 : index
    %1 = vector.load %arg2[%c0_1, %c0_2] : memref<8x4xf32, #tpu.memory_space<vmem>>, vector<8x4xf32>
    %2 = arith.truncf %1 : vector<8x4xf32> to vector<8x4xbf16>
    %c0_3 = arith.constant 0 : index
    %c0_4 = arith.constant 0 : index
    %c0_5 = arith.constant 0 : index
    %3 = vector.load %arg3[%c0_3, %c0_4, %c0_5] : memref<3x144x128xbf16, #tpu.memory_space<vmem>>, vector<1x4x128xbf16>
    %4 = vector.shape_cast %3 : vector<1x4x128xbf16> to vector<4x128xbf16>
    %c0_6 = arith.constant 0 : index
    %c4 = arith.constant 4 : index
    %c0_7 = arith.constant 0 : index
    %5 = vector.load %arg3[%c0_6, %c4, %c0_7] : memref<3x144x128xbf16, #tpu.memory_space<vmem>>, vector<1x1x128xbf16>
    %6 = vector.shape_cast %5 : vector<1x1x128xbf16> to vector<1x128xbf16>
    %7 = arith.extf %6 : vector<1x128xbf16> to vector<1x128xf32>
    %c0_8 = arith.constant 0 : index
    %c128 = arith.constant 128 : index
    %c0_9 = arith.constant 0 : index
    %8 = vector.load %arg3[%c0_8, %c128, %c0_9] : memref<3x144x128xbf16, #tpu.memory_space<vmem>>, vector<1x1x128xbf16>
    %9 = vector.shape_cast %8 : vector<1x1x128xbf16> to vector<1x128xbf16>
    %10 = arith.extf %9 : vector<1x128xbf16> to vector<1x128xf32>
    %cst = arith.constant dense<0.000000e+00> : vector<8x128xf32>
    %11 = tpu.matmul %2, %4, %cst {dimension_numbers = #tpu.dot_dimension_numbers<[1], [0], [0], [1], [0, 0, 1, 1], [], []>} : vector<8x4xbf16>, vector<4x128xbf16>, vector<8x128xf32> -> vector<8x128xf32>
    %12 = vector.broadcast %0 : f32 to vector<1x128xf32>
    %13 = arith.mulf %12, %7 : vector<1x128xf32>
    %14 = arith.addf %10, %13 : vector<1x128xf32>
    %15 = vector.broadcast %14 : vector<1x128xf32> to vector<8x128xf32>
    %16 = arith.addf %11, %15 : vector<8x128xf32>
    %cst_10 = arith.constant 0.000000e+00 : f32
    %17 = vector.broadcast %cst_10 : f32 to vector<8x128xf32>
    %18 = arith.maximumf %16, %17 : vector<8x128xf32>
    %c1 = arith.constant 1 : index
    %c0_11 = arith.constant 0 : index
    %c0_12 = arith.constant 0 : index
    %19 = vector.load %arg3[%c1, %c0_11, %c0_12] : memref<3x144x128xbf16, #tpu.memory_space<vmem>>, vector<1x128x128xbf16>
    %20 = vector.shape_cast %19 : vector<1x128x128xbf16> to vector<128x128xbf16>
    %c1_13 = arith.constant 1 : index
    %c128_14 = arith.constant 128 : index
    %c0_15 = arith.constant 0 : index
    %21 = vector.load %arg3[%c1_13, %c128_14, %c0_15] : memref<3x144x128xbf16, #tpu.memory_space<vmem>>, vector<1x1x128xbf16>
    %22 = vector.shape_cast %21 : vector<1x1x128xbf16> to vector<1x128xbf16>
    %23 = arith.extf %22 : vector<1x128xbf16> to vector<1x128xf32>
    %24 = arith.truncf %18 : vector<8x128xf32> to vector<8x128xbf16>
    %cst_16 = arith.constant dense<0.000000e+00> : vector<8x128xf32>
    %25 = tpu.matmul %24, %20, %cst_16 {dimension_numbers = #tpu.dot_dimension_numbers<[1], [0], [0], [1], [0, 0, 1, 1], [], []>} : vector<8x128xbf16>, vector<128x128xbf16>, vector<8x128xf32> -> vector<8x128xf32>
    %26 = vector.broadcast %23 : vector<1x128xf32> to vector<8x128xf32>
    %27 = arith.addf %25, %26 : vector<8x128xf32>
    %cst_17 = arith.constant 0.000000e+00 : f32
    %28 = vector.broadcast %cst_17 : f32 to vector<8x128xf32>
    %29 = arith.maximumf %27, %28 : vector<8x128xf32>
    %c2 = arith.constant 2 : index
    %c0_18 = arith.constant 0 : index
    %c0_19 = arith.constant 0 : index
    %30 = vector.load %arg3[%c2, %c0_18, %c0_19] : memref<3x144x128xbf16, #tpu.memory_space<vmem>>, vector<1x128x128xbf16>
    %31 = vector.shape_cast %30 : vector<1x128x128xbf16> to vector<128x128xbf16>
    %c2_20 = arith.constant 2 : index
    %c128_21 = arith.constant 128 : index
    %c0_22 = arith.constant 0 : index
    %32 = vector.load %arg3[%c2_20, %c128_21, %c0_22] : memref<3x144x128xbf16, #tpu.memory_space<vmem>>, vector<1x1x128xbf16>
    %33 = vector.shape_cast %32 : vector<1x1x128xbf16> to vector<1x128xbf16>
    %34 = arith.extf %33 : vector<1x128xbf16> to vector<1x128xf32>
    %35 = arith.truncf %29 : vector<8x128xf32> to vector<8x128xbf16>
    %cst_23 = arith.constant dense<0.000000e+00> : vector<8x128xf32>
    %36 = tpu.matmul %35, %31, %cst_23 {dimension_numbers = #tpu.dot_dimension_numbers<[1], [0], [0], [1], [0, 0, 1, 1], [], []>} : vector<8x128xbf16>, vector<128x128xbf16>, vector<8x128xf32> -> vector<8x128xf32>
    %37 = vector.broadcast %34 : vector<1x128xf32> to vector<8x128xf32>
    %38 = arith.addf %36, %37 : vector<8x128xf32>
    %39 = vector.extract_strided_slice %38 {offsets = [0, 0], sizes = [8, 4], strides = [1, 1]} : vector<8x128xf32> to vector<8x4xf32>
    %c0_24 = arith.constant 0 : index
    %c0_25 = arith.constant 0 : index
    %40 = vector.load %arg4[%c0_24, %c0_25] : memref<8x4xf32, #tpu.memory_space<vmem>>, vector<8x4xf32>
    tpu.vector_store %arg4[%c0_24, %c0_25], %39 {strides = array<i32>} : memref<8x4xf32, #tpu.memory_space<vmem>>, vector<8x4xf32>,
    return
  }
  func.func @transform_0(%arg0: i32) -> (i32, i32) {
    %c0_i32 = arith.constant 0 : i32
    %c0_i32_0 = arith.constant 0 : i32
    %c0_i32_1 = arith.constant 0 : i32
    return %c0_i32, %c0_i32_0 : i32, i32
  }
  func.func @transform_1(%arg0: i32) -> (i32, i32) {
    %c0_i32 = arith.constant 0 : i32
    %c0_i32_0 = arith.constant 0 : i32
    return %arg0, %c0_i32 : i32, i32
  }
  func.func @transform_2(%arg0: i32) -> (i32, i32, i32) {
    %c0_i32 = arith.constant 0 : i32
    %c0_i32_0 = arith.constant 0 : i32
    %c0_i32_1 = arith.constant 0 : i32
    %c0_i32_2 = arith.constant 0 : i32
    return %c0_i32, %c0_i32_0, %c0_i32_1 : i32, i32, i32
  }
  func.func @transform_3(%arg0: i32) -> (i32, i32) {
    %c0_i32 = arith.constant 0 : i32
    %c0_i32_0 = arith.constant 0 : i32
    return %arg0, %c0_i32 : i32, i32
  }
}

</mosaic_0001>

<llo_original>
// kernel: tpu_custom_call.1
$region0: #{tpu_custom_call.1}
  #allocation0 [shape = 'u32[]', space=smem, size = 0x4, offset = 0x4, fixed_abs, tag = 'smem constant byte address 0x4 - core index']
  #allocation1 [shape = 'u32[144,128]{1,0:T(1,128)}', space=vmem, size = 0x12000, scoped, tag = 'internal scratch']
  #allocation2 [shape = 'f32[1,1]{1,0:T(1,128)S(6)}', space=smem, size = 0x200, scoped, tag = 'scoped memory for tpu_custom_call.1']
  %s0 = inlined_call_operand.<no memory space> [shape: f32[1,1], index: 0, kind: input, shape index: {}]
  %s1 = inlined_call_operand.vmem [shape: f32[8,4], index: 1, kind: input, shape index: {}]
  %s2 = inlined_call_operand.hbm [shape: bf16[3,144,128], index: 2, kind: input, shape index: {}]
  %s3 = inlined_call_operand.vmem [shape: f32[8,4], index: 3, kind: output, shape index: {}]
  %s4 = sld [smem:[#allocation0]]
  $region26: #{tpu_custom_call.1} parent=0
    _
  %s6 = ssub.s32 1, %s4
  %s7 = scalar_select 0, %s6, %s4
  %8 = sst [smem:[#allocation2]] %s0
  $region1: #{tpu_custom_call.1} parent=0
    #allocation3 [shape = 'u8[110592]{0}', space=vmem, size = 0x1b000, scoped, tag = 'input window, operand 2, single buffered']
    #allocation4 [shape = 's32[1]{0}', space=sflag, size = 0x4, scoped, tag = 'scoped memory for tpu_custom_call.1']
    %9 = vsyncpa [#allocation4], 0
    // Predicated region
    $region2: #{tpu_custom_call.1} parent=1 // pred_check
      _
    $region3: #{tpu_custom_call.1} parent=1 // pred_check_branch
      %11 = sbr.rel (0) target = $region5
    $region4: #{tpu_custom_call.1} parent=1 // pred_region
      _
    $region5: #{tpu_custom_call.1} parent=1 // pred_fallthru
      _
    // Predicated region
    $region6: #{tpu_custom_call.1} parent=1 // pred_check
      _
    $region7: #{tpu_custom_call.1} parent=1 // pred_check_branch
      %13 = sbr.rel (0) target = $region9
    $region8: #{tpu_custom_call.1} parent=1 // pred_region
      _
    $region9: #{tpu_custom_call.1} parent=1 // pred_fallthru
      _
    // Predicated region
    $region10: #{tpu_custom_call.1} parent=1 // pred_check
      _
    $region11: #{tpu_custom_call.1} parent=1 // pred_check_branch
      %15 = sbr.rel (0) target = $region13
    $region12: #{tpu_custom_call.1} parent=1 // pred_region
      %s17 = ssub.s32 3456, 3456
      %18 = vsyncadd [#allocation4], %s17
      %s19 = sshll.u32 [#allocation3], 4
      %s20 = int_to_ptr.vmem [resolvable:$true] %s19
      %25 = dma.hbm_to_vmem [thread:$0]  %s2, 3456, %s20, [#allocation4], 64, 64, 4
    $region13: #{tpu_custom_call.1} parent=1 // pred_fallthru
      _
    // Predicated region
    $region14: #{tpu_custom_call.1} parent=1 // pred_check
      _
    $region15: #{tpu_custom_call.1} parent=1 // pred_check_branch
      %27 = sbr.rel (0) target = $region17
    $region16: #{tpu_custom_call.1} parent=1 // pred_region
      %28 = dma.done [#allocation4], 3456
    $region17: #{tpu_custom_call.1} parent=1 // pred_fallthru
      _
    %s30 = sld [smem:[#allocation2]]
    %v31 = vld [vmem:[%s1] sm:$0xff]
    %v32 = vpack.c.bf16 %v31, %v31
    %v33 = vld [vmem:[#allocation3] sm:$0x3]
    %v34 = vld [vmem:[#allocation3] sm:$0x4]
    %v35 = vunpack.c.l.bf16 %v34
    %v36 = vld [vmem:[#allocation3 + $0x40] sm:$0x1]
    %v37 = vunpack.c.l.bf16 %v36
    %v38 = vstv %s30
    %v39 = vmul.f32 %v38, %v35
    %v41 = vrot.slane %v39, 4
    %v43 = vadd.f32 %v37, %v41
    %v44 = vlaneseq
    %v45 = vshrl.u32 %v44, 7
    %v46 = vsub.s32 0, %v45
    %v47 = vrot.slane %v43, %v46
    %vm48 = vcmask 31744
    %v50 = vsel %vm48, %v32, 0
    %vm52 = vcmask 1041408
    %v54 = vsel %vm52, %v33, 0
    %56 = vmatprep.subr.bf16.mxu0 0
    %57 = vmatpush1.bf16.msra.mxu0 %v54
    %58 = vmatprep.subr.bf16.mxu0 0
    %59 = vmatpush1.bf16.msra.mxu0 0
    %60 = vmatprep.subr.bf16.mxu0 0
    %61 = vmatpush1.bf16.msra.mxu0 0
    %62 = vmatprep.subr.bf16.mxu0 0
    %63 = vmatpush1.bf16.msra.mxu0 0
    %64 = vmatprep.subr.bf16.mxu0 0
    %65 = vmatpush1.bf16.msra.mxu0 0
    %66 = vmatprep.subr.bf16.mxu0 0
    %67 = vmatpush1.bf16.msra.mxu0 0
    %68 = vmatprep.subr.bf16.mxu0 0
    %69 = vmatpush1.bf16.msra.mxu0 0
    %70 = vmatprep.subr.bf16.mxu0 0
    %71 = vmatpush1.bf16.msra.mxu0 0
    %72 = vmatprep.subr.bf16.mxu0 0
    %73 = vmatpush1.bf16.msra.mxu0 0
    %74 = vmatprep.subr.bf16.mxu0 0
    %75 = vmatpush1.bf16.msra.mxu0 0
    %76 = vmatprep.subr.bf16.mxu0 0
    %77 = vmatpush1.bf16.msra.mxu0 0
    %78 = vmatprep.subr.bf16.mxu0 0
    %79 = vmatpush1.bf16.msra.mxu0 0
    %80 = vmatprep.subr.bf16.mxu0 0
    %81 = vmatpush1.bf16.msra.mxu0 0
    %82 = vmatprep.subr.bf16.mxu0 0
    %83 = vmatpush1.bf16.msra.mxu0 0
    %84 = vmatprep.subr.bf16.mxu0 0
    %85 = vmatpush1.bf16.msra.mxu0 0
    %86 = vmatprep.subr.bf16.mxu0 0
    %87 = vmatpush1.bf16.msra.mxu0 0
    %88 = vmatprep.mubr.bf16.mxu0 0
    %89 = vmatmul.mubr.bf16.gmra.mrb[0].mxu0 %v50
    %v90 = vpop.f32.mrb[0].mxu0
    %v91 = vadd.f32 %v47, %v90
    %v92 = vpop.f32.mrb[0].mxu0
    %v93 = vpop.f32.mrb[0].mxu0
    %v94 = vpop.f32.mrb[0].mxu0
    %95 = vdwg.mxu0
    %v96 = vmax.f32 %v91, 0.0
    %s97 = scalar_lea.vmem [#allocation3], 72
    %v98 = vld [vmem:[%s97] sm:$0xf]
    %v99 = vld [vmem:[%s97 + $0x4] sm:$0xf]
    %v100 = vld [vmem:[%s97 + $0x8] sm:$0xf]
    %v101 = vld [vmem:[%s97 + $0xc] sm:$0xf]
    %v102 = vld [vmem:[%s97 + $0x10] sm:$0xf]
    %v103 = vld [vmem:[%s97 + $0x14] sm:$0xf]
    %v104 = vld [vmem:[%s97 + $0x18] sm:$0xf]
    %v105 = vld [vmem:[%s97 + $0x1c] sm:$0xf]
    %v106 = vld [vmem:[%s97 + $0x20] sm:$0xf]
    %v107 = vld [vmem:[%s97 + $0x24] sm:$0xf]
    %v108 = vld [vmem:[%s97 + $0x28] sm:$0xf]
    %v109 = vld [vmem:[%s97 + $0x2c] sm:$0xf]
    %v110 = vld [vmem:[%s97 + $0x30] sm:$0xf]
    %v111 = vld [vmem:[%s97 + $0x34] sm:$0xf]
    %v112 = vld [vmem:[%s97 + $0x38] sm:$0xf]
    %v113 = vld [vmem:[%s97 + $0x3c] sm:$0xf]
    %v114 = vld [vmem:[%s97 + $0x40] sm:$0x1]
    %v115 = vunpack.c.l.bf16 %v114
    %v116 = vpack.c.bf16 %v96, %v96
    %v117 = vlaneseq
    %v118 = vshrl.u32 %v117, 7
    %v119 = vsub.s32 0, %v118
    %v120 = vrot.slane %v115, %v119
    %v137 = vunpack.c.l.b16 %v98
    %v138 = vunpack.c.l.b16 %v99
    %v139 = vunpack.c.l.b16 %v100
    %v140 = vunpack.c.l.b16 %v101
    %v141 = vunpack.c.l.b16 %v102
    %v142 = vunpack.c.l.b16 %v103
    %v143 = vunpack.c.l.b16 %v104
    %v144 = vunpack.c.l.b16 %v105
    %v145 = vunpack.c.l.b16 %v106
    %v146 = vunpack.c.l.b16 %v107
    %v147 = vunpack.c.l.b16 %v108
    %v148 = vunpack.c.l.b16 %v109
    %v149 = vunpack.c.l.b16 %v110
    %v150 = vunpack.c.l.b16 %v111
    %v151 = vunpack.c.l.b16 %v112
    %v152 = vunpack.c.l.b16 %v113
    %v153 = vpack.c.b16 %v138, %v137
    %v154 = vpack.c.b16 %v140, %v139
    %v155 = vpack.c.b16 %v142, %v141
    %v156 = vpack.c.b16 %v144, %v143
    %v157 = vpack.c.b16 %v146, %v145
    %v158 = vpack.c.b16 %v148, %v147
    %v159 = vpack.c.b16 %v150, %v149
    %v160 = vpack.c.b16 %v152, %v151
    %169 = vmatprep.subr.bf16.mxu0 0
    %170 = vmatpush1.bf16.msra.mxu0 %v153
    %171 = vmatprep.subr.bf16.mxu0 0
    %172 = vmatpush1.bf16.msra.mxu0 %v154
    %173 = vmatprep.subr.bf16.mxu0 0
    %174 = vmatpush1.bf16.msra.mxu0 %v155
    %175 = vmatprep.subr.bf16.mxu0 0
    %176 = vmatpush1.bf16.msra.mxu0 %v156
    %177 = vmatprep.subr.bf16.mxu0 0
    %178 = vmatpush1.bf16.msra.mxu0 %v157
    %179 = vmatprep.subr.bf16.mxu0 0
    %180 = vmatpush1.bf16.msra.mxu0 %v158
    %181 = vmatprep.subr.bf16.mxu0 0
    %182 = vmatpush1.bf16.msra.mxu0 %v159
    %183 = vmatprep.subr.bf16.mxu0 0
    %184 = vmatpush1.bf16.msra.mxu0 %v160
    %185 = vmatprep.subr.bf16.mxu0 0
    %186 = vmatpush1.bf16.msra.mxu0 0
    %187 = vmatprep.subr.bf16.mxu0 0
    %188 = vmatpush1.bf16.msra.mxu0 0
    %189 = vmatprep.subr.bf16.mxu0 0
    %190 = vmatpush1.bf16.msra.mxu0 0
    %191 = vmatprep.subr.bf16.mxu0 0
    %192 = vmatpush1.bf16.msra.mxu0 0
    %193 = vmatprep.subr.bf16.mxu0 0
    %194 = vmatpush1.bf16.msra.mxu0 0
    %195 = vmatprep.subr.bf16.mxu0 0
    %196 = vmatpush1.bf16.msra.mxu0 0
    %197 = vmatprep.subr.bf16.mxu0 0
    %198 = vmatpush1.bf16.msra.mxu0 0
    %199 = vmatprep.subr.bf16.mxu0 0
    %200 = vmatpush1.bf16.msra.mxu0 0
    %201 = vmatprep.mubr.bf16.mxu0 0
    %202 = vmatmul.mubr.bf16.gmra.mrb[0].mxu0 %v116
    %v203 = vpop.f32.mrb[0].mxu0
    %v204 = vadd.f32 %v120, %v203
    %v205 = vpop.f32.mrb[0].mxu0
    %v206 = vpop.f32.mrb[0].mxu0
    %v207 = vpop.f32.mrb[0].mxu0
    %208 = vdwg.mxu0
    %v209 = vmax.f32 %v204, 0.0
    %s210 = scalar_lea.vmem [#allocation3], 144
    %v211 = vld [vmem:[%s210] sm:$0xf]
    %v212 = vld [vmem:[%s210 + $0x4] sm:$0xf]
    %v213 = vld [vmem:[%s210 + $0x8] sm:$0xf]
    %v214 = vld [vmem:[%s210 + $0xc] sm:$0xf]
    %v215 = vld [vmem:[%s210 + $0x10] sm:$0xf]
    %v216 = vld [vmem:[%s210 + $0x14] sm:$0xf]
    %v217 = vld [vmem:[%s210 + $0x18] sm:$0xf]
    %v218 = vld [vmem:[%s210 + $0x1c] sm:$0xf]
    %v219 = vld [vmem:[%s210 + $0x20] sm:$0xf]
    %v220 = vld [vmem:[%s210 + $0x24] sm:$0xf]
    %v221 = vld [vmem:[%s210 + $0x28] sm:$0xf]
    %v222 = vld [vmem:[%s210 + $0x2c] sm:$0xf]
    %v223 = vld [vmem:[%s210 + $0x30] sm:$0xf]
    %v224 = vld [vmem:[%s210 + $0x34] sm:$0xf]
    %v225 = vld [vmem:[%s210 + $0x38] sm:$0xf]
    %v226 = vld [vmem:[%s210 + $0x3c] sm:$0xf]
    %v227 = vld [vmem:[%s210 + $0x40] sm:$0x1]
    %v228 = vunpack.c.l.bf16 %v227
    %v229 = vpack.c.bf16 %v209, %v209
    %v230 = vlaneseq
    %v231 = vshrl.u32 %v230, 7
    %v232 = vsub.s32 0, %v231
    %v233 = vrot.slane %v228, %v232
    %v250 = vunpack.c.l.b16 %v211
    %v251 = vunpack.c.l.b16 %v212
    %v252 = vunpack.c.l.b16 %v213
    %v253 = vunpack.c.l.b16 %v214
    %v254 = vunpack.c.l.b16 %v215
    %v255 = vunpack.c.l.b16 %v216
    %v256 = vunpack.c.l.b16 %v217
    %v257 = vunpack.c.l.b16 %v218
    %v258 = vunpack.c.l.b16 %v219
    %v259 = vunpack.c.l.b16 %v220
    %v260 = vunpack.c.l.b16 %v221
    %v261 = vunpack.c.l.b16 %v222
    %v262 = vunpack.c.l.b16 %v223
    %v263 = vunpack.c.l.b16 %v224
    %v264 = vunpack.c.l.b16 %v225
    %v265 = vunpack.c.l.b16 %v226
    %v266 = vpack.c.b16 %v251, %v250
    %v267 = vpack.c.b16 %v253, %v252
    %v268 = vpack.c.b16 %v255, %v254
    %v269 = vpack.c.b16 %v257, %v256
    %v270 = vpack.c.b16 %v259, %v258
    %v271 = vpack.c.b16 %v261, %v260
    %v272 = vpack.c.b16 %v263, %v262
    %v273 = vpack.c.b16 %v265, %v264
    %282 = vmatprep.subr.bf16.mxu0 0
    %283 = vmatpush1.bf16.msra.mxu0 %v266
    %284 = vmatprep.subr.bf16.mxu0 0
    %285 = vmatpush1.bf16.msra.mxu0 %v267
    %286 = vmatprep.subr.bf16.mxu0 0
    %287 = vmatpush1.bf16.msra.mxu0 %v268
    %288 = vmatprep.subr.bf16.mxu0 0
    %289 = vmatpush1.bf16.msra.mxu0 %v269
    %290 = vmatprep.subr.bf16.mxu0 0
    %291 = vmatpush1.bf16.msra.mxu0 %v270
    %292 = vmatprep.subr.bf16.mxu0 0
    %293 = vmatpush1.bf16.msra.mxu0 %v271
    %294 = vmatprep.subr.bf16.mxu0 0
    %295 = vmatpush1.bf16.msra.mxu0 %v272
    %296 = vmatprep.subr.bf16.mxu0 0
    %297 = vmatpush1.bf16.msra.mxu0 %v273
    %298 = vmatprep.subr.bf16.mxu0 0
    %299 = vmatpush1.bf16.msra.mxu0 0
    %300 = vmatprep.subr.bf16.mxu0 0
    %301 = vmatpush1.bf16.msra.mxu0 0
    %302 = vmatprep.subr.bf16.mxu0 0
    %303 = vmatpush1.bf16.msra.mxu0 0
    %304 = vmatprep.subr.bf16.mxu0 0
    %305 = vmatpush1.bf16.msra.mxu0 0
    %306 = vmatprep.subr.bf16.mxu0 0
    %307 = vmatpush1.bf16.msra.mxu0 0
    %308 = vmatprep.subr.bf16.mxu0 0
    %309 = vmatpush1.bf16.msra.mxu0 0
    %310 = vmatprep.subr.bf16.mxu0 0
    %311 = vmatpush1.bf16.msra.mxu0 0
    %312 = vmatprep.subr.bf16.mxu0 0
    %313 = vmatpush1.bf16.msra.mxu0 0
    %314 = vmatprep.mubr.bf16.mxu0 0
    %315 = vmatmul.mubr.bf16.gmra.mrb[0].mxu0 %v229
    %v316 = vpop.f32.mrb[0].mxu0
    %v317 = vadd.f32 %v233, %v316
    %v318 = vpop.f32.mrb[0].mxu0
    %v319 = vpop.f32.mrb[0].mxu0
    %v320 = vpop.f32.mrb[0].mxu0
    %321 = vdwg.mxu0
    %322 = vst.msk [vmem:[%s3] sm:$0xff] %vm48, %v317
    // Predicated region
    $region18: #{tpu_custom_call.1} parent=1 // pred_check
      _
    $region19: #{tpu_custom_call.1} parent=1 // pred_check_branch
      %324 = sbr.rel (0) target = $region21
    $region20: #{tpu_custom_call.1} parent=1 // pred_region
      _
    $region21: #{tpu_custom_call.1} parent=1 // pred_fallthru
      _
    // Predicated region
    $region22: #{tpu_custom_call.1} parent=1 // pred_check
      _
    $region23: #{tpu_custom_call.1} parent=1 // pred_check_branch
      %326 = sbr.rel (0) target = $region25
    $region24: #{tpu_custom_call.1} parent=1 // pred_region
      _
    $region25: #{tpu_custom_call.1} parent=1 // pred_fallthru
      _
    %327 = vsyncpa [#allocation4], 1

</llo_original>
